<compile_context>
chip_gen: v5e
topology: v5e:2x2
jax: 0.10.0
libtpu: 0.0.40
codegen_flags: <defaults>
</compile_context>

<pallas_src>
import functools

import jax
import jax.numpy as jnp
from jax.experimental import pallas as pl
from jax.experimental.pallas import tpu as pltpu


# ----------------------------- configuration --------------------------------
class Cfg:
    lambda_rgb = 1.0
    lambda_pca_std = 1.0
    lambda_cls_curliness = 1.0
    curliness_dim = 4
    g_hidden_dim = 32
    g_hidden_layer_num = 3
    subspace_dim = 8
    SEAN_code = 16


LANES = 128  # lane width of the wide activation / weight slabs


def _round_up(x, m):
    return ((x + m - 1) // m) * m


# ------------------------------- the kernel ---------------------------------
def eigengen_kernel(xin_ref, p_ref, out_ref, *, n_layers: int, hidden: int):
    """One batch tile.

    xin_ref : [TB, 128]  lanes 0:in_dim = x, lanes H:H+L*S = flattened noise,
                         lane 127 = 1.0 (bias lane), all other lanes = 0.
    p_ref   : [L+1, 128, 128]  fused per-layer weights (leading-axis indexed).
    out_ref : [TB, 128]  SEAN code at lanes 0:C, exact zeros elsewhere.
    """
    L, H = n_layers, hidden
    xin = xin_ref[...]                                        # [TB, 128] f32

    # Loop-invariant lanes (noise + bias-one).  Depends only on the input, so
    # it is computed once, off the serial dependency chain.
    lane = jax.lax.broadcasted_iota(jnp.int32, xin.shape, 1)
    carry = jnp.where(lane >= H, xin, 0.0)                    # zeros at lanes 0:H

    a = xin
    for l in range(L):
        # Fused main Linear + SubspaceLayer + bias (bias rides on lane 127==1).
        h = jnp.dot(a, p_ref[l], preferred_element_type=jnp.float32)
        # h has exact zeros at lanes H:128 (those weight columns are zero), so
        # one VPU add re-installs the noise / bias-one lanes for the next layer.
        a = jnp.maximum(h, 0.2 * h) + carry                   # LeakyReLU(0.2)

    # Last Linear (H -> SEAN_code), bias again via the constant-1 lane.
    out = jnp.dot(a, p_ref[L], preferred_element_type=jnp.float32)
    out_ref[...] = out.astype(out_ref.dtype)


# ------------------------------- parameters ---------------------------------
def init_params(cfg, key):
    """Synthetic init mirroring the PyTorch module's parameter shapes."""
    in_dim = 0
    if cfg.lambda_rgb:
        in_dim += 3
    if cfg.lambda_pca_std:
        in_dim += 1
    if cfg.lambda_cls_curliness:
        in_dim += cfg.curliness_dim

    H, L, S, C = cfg.g_hidden_dim, cfg.g_hidden_layer_num, cfg.subspace_dim, cfg.SEAN_code
    keys = jax.random.split(key, 8)

    # Linear layers: W stored as [in, out] so y = x @ W + b.
    w_in = jax.random.normal(keys[0], (in_dim, H), jnp.float32) * 0.1
    b_in = jax.random.normal(keys[1], (1, H), jnp.float32) * 0.01
    n_mid = L - 1
    w_mid = jax.random.normal(keys[2], (n_mid, H, H), jnp.float32) * 0.1
    b_mid = jax.random.normal(keys[3], (n_mid, H), jnp.float32) * 0.01
    w_last = jax.random.normal(keys[4], (H, C), jnp.float32) * 0.1
    b_last = jax.random.normal(keys[5], (1, C), jnp.float32) * 0.01

    # Subspace layers: orthonormal-row U, descending L vector, zero mu.
    u_list = []
    ukeys = jax.random.split(keys[6], L)
    for l in range(L):
        a = jax.random.normal(ukeys[l], (H, S), jnp.float32)
        q, _ = jnp.linalg.qr(a)          # [H, S] orthonormal columns
        u_list.append(q.T)               # [S, H] orthonormal rows
    u = jnp.stack(u_list, axis=0)        # [L, S, H]
    lvec = jnp.tile(
        jnp.array([3.0 * i for i in range(S, 0, -1)], jnp.float32)[None, :], (L, 1)
    )                                    # [L, S]
    mu = jnp.zeros((L, H), jnp.float32)  # [L, H]

    return dict(w_in=w_in, b_in=b_in, w_mid=w_mid, b_mid=b_mid,
                w_last=w_last, b_last=b_last, u=u, lvec=lvec, mu=mu,
                in_dim=in_dim)


def pack_params(cfg, params):
    """One-time fusion + packing into a per-layer slab P[L+1, 128, 128] (f32).

    Layer l < L   (fused Linear + SubspaceLayer, lvec/mu folded):
      P[l, 0:H,                0:H] = W_in (zero-row-padded) if l==0 else W_mid[l-1]
      P[l, H+l*S : H+(l+1)*S,  0:H] = lvec[l,:,None] * U[l]
      P[l, 127,                0:H] = b + mu[l]            (bias row, hits the 1-lane)
    Layer L (output Linear):
      P[L, 0:H, 0:C] = W_last ;  P[L, 127, 0:C] = b_last
    All other entries are exactly zero, so every matmul output has exact zeros
    at lanes >= H (>= C for the last layer).
    """
    H, L, S, C = cfg.g_hidden_dim, cfg.g_hidden_layer_num, cfg.subspace_dim, cfg.SEAN_code
    in_dim = params["in_dim"]
    assert in_dim <= H, "input dim must fit within hidden width"
    assert H + L * S < LANES, "need a free lane for the bias-one trick"
    assert C <= LANES
    bias_row = LANES - 1

    # Fold lvec into U:  z @ (lvec[:,None]*U) == (lvec*z) @ U
    u_scaled = params["lvec"][:, :, None] * params["u"]            # [L, S, H]

    P = jnp.zeros((L + 1, LANES, LANES), jnp.float32)
    for l in range(L):
        if l == 0:
            w_main = jnp.zeros((H, H), jnp.float32).at[:in_dim, :].set(params["w_in"])
            b_main = params["b_in"][0]
        else:
            w_main = params["w_mid"][l - 1]
            b_main = params["b_mid"][l - 1]
        P = P.at[l, 0:H, 0:H].set(w_main)
        P = P.at[l, H + l * S:H + (l + 1) * S, 0:H].set(u_scaled[l])
        P = P.at[l, bias_row, 0:H].set(b_main + params["mu"][l])
    P = P.at[L, 0:H, 0:C].set(params["w_last"])
    P = P.at[L, bias_row, 0:C].set(params["b_last"][0])
    return P


# -------------------------------- wrapper ------------------------------------
def eigen_generator_forward(cfg, packed_params, data):
    H, L, S, C = cfg.g_hidden_dim, cfg.g_hidden_layer_num, cfg.subspace_dim, cfg.SEAN_code
    B = data["noise"].shape[0]

    # Input concat order matches the PyTorch forward:
    # [noise_curliness, rgb_mean, pca_std].
    parts = []
    if cfg.lambda_cls_curliness:
        parts.append(data["noise_curliness"])
    if cfg.lambda_rgb:
        parts.append(data["rgb_mean"])
    if cfg.lambda_pca_std:
        parts.append(data["pca_std"])
    x = jnp.concatenate(parts, axis=1).astype(jnp.float32)          # [B, in_dim]
    noise_flat = data["noise"].reshape(B, L * S).astype(jnp.float32)

    # Batch tiling: multiple of 8 sublanes; 256-row tiles at realistic batch
    # sizes (fills the MXU M dimension, amortizes per-step overhead).
    TILE_B = min(256, _round_up(B, 8))
    B_pad = _round_up(B, TILE_B)

    # Single lane-packed input slab: x | noise | zeros | 1.0 (bias lane).
    xin = jnp.zeros((B_pad, LANES), jnp.float32)
    xin = xin.at[:B, :x.shape[1]].set(x)
    xin = xin.at[:B, H:H + L * S].set(noise_flat)
    xin = xin.at[:B, LANES - 1].set(1.0)

    kern = functools.partial(eigengen_kernel, n_layers=L, hidden=H)

    out = pl.pallas_call(
        kern,
        out_shape=jax.ShapeDtypeStruct((B_pad, LANES), jnp.float32),
        grid=(B_pad // TILE_B,),
        in_specs=[
            pl.BlockSpec((TILE_B, LANES), lambda i: (i, 0)),
            # Constant index_map: the ~256 KiB fused-weight slab is DMA'd once
            # and stays resident in VMEM across all batch tiles.
            pl.BlockSpec((L + 1, LANES, LANES), lambda i: (0, 0, 0)),
        ],
        out_specs=pl.BlockSpec((TILE_B, LANES), lambda i: (i, 0)),
        compiler_params=pltpu.CompilerParams(dimension_semantics=("parallel",)),
    )(xin, packed_params)
    return {"code": out[:B, :C]}


# ------------------------------ pure-JAX reference ---------------------------
def reference_forward(cfg, params, data):
    """Un-fused reference using the original parameters (validates the fusion)."""
    B = data["noise"].shape[0]
    L, S = cfg.g_hidden_layer_num, cfg.subspace_dim
    noise = data["noise"].reshape(B, L, S)
    parts = [data["noise_curliness"], data["rgb_mean"], data["pca_std"]]
    x = jnp.concatenate(parts, axis=1)
    x_mid = x @ params["w_in"] + params["b_in"]
    for l in range(L):
        z = noise[:, l, :]
        sub = (params["lvec"][l] * z) @ params["u"][l] + params["mu"][l]
        x_mid = x_mid + sub
        x_act = jnp.where(x_mid > 0, x_mid, 0.2 * x_mid)
        if l < L - 1:
            x_mid = x_act @ params["w_mid"][l] + params["b_mid"][l]
        else:
            x_mid = x_act @ params["w_last"] + params["b_last"]
    return {"code": x_mid}


# ---------------------------------- main -------------------------------------
if __name__ == "__main__":
    cfg = Cfg()
    key = jax.random.PRNGKey(0)
    pkey, dkey = jax.random.split(key)
    params = init_params(cfg, pkey)
    packed = pack_params(cfg, params)   # one-time fusion + packing

    B = 2
    k1, k2, k3, k4 = jax.random.split(dkey, 4)
    data = {
        "noise": jax.random.normal(
            k1, (B, cfg.g_hidden_layer_num * cfg.subspace_dim), jnp.float32),
        "noise_curliness": jax.random.normal(k2, (B, cfg.curliness_dim), jnp.float32),
        "rgb_mean": jax.random.normal(k3, (B, 3), jnp.float32),
        "pca_std": jax.random.normal(k4, (B, 1), jnp.float32),
    }

    out = eigen_generator_forward(cfg, packed, data)
    code = jax.block_until_ready(out["code"])

    ref = reference_forward(cfg, params, data)["code"]
    assert code.shape == (B, cfg.SEAN_code)
    assert jnp.allclose(code, ref, atol=1e-4, rtol=1e-4), "mismatch vs reference"

    print("KERNEL_OK")
</pallas_src>

<mosaic_0001>
module attributes {stable_mosaic.version = 11 : i64} {
  func.func @eigengen_kernel(%arg0: i32, %arg1: memref<8x128xf32, #tpu.memory_space<vmem>>, %arg2: memref<4x128x128xf32, #tpu.memory_space<vmem>>, %arg3: memref<8x128xf32, #tpu.memory_space<vmem>>) attributes {dimension_semantics = [#tpu.dimension_semantics<parallel>], iteration_bounds = array<i64: 1>, scalar_prefetch = 0 : i64, scratch_operands = 0 : i64, tpu.core_type = #tpu.core_type<tc>, window_params = [{transform_indices = @transform_0, window_bounds = array<i64: 8, 128>}, {pipeline_mode = #tpu.pipeline_mode<synchronous>, transform_indices = @transform_1, window_bounds = array<i64: 4, 128, 128>}, {transform_indices = @transform_2, window_bounds = array<i64: 8, 128>}]} {
    %c0 = arith.constant 0 : index
    %c0_0 = arith.constant 0 : index
    %0 = vector.load %arg1[%c0, %c0_0] : memref<8x128xf32, #tpu.memory_space<vmem>>, vector<8x128xf32>
    %1 = tpu.iota {dimensions = array<i32: 1>} : vector<8x128xi32>
    %c32_i32 = arith.constant 32 : i32
    %2 = vector.broadcast %c32_i32 : i32 to vector<8x128xi32>
    %3 = arith.cmpi sge, %1, %2 : vector<8x128xi32>
    %cst = arith.constant 0.000000e+00 : f32
    %4 = vector.broadcast %cst : f32 to vector<8x128xf32>
    %5 = arith.select %3, %0, %4 : vector<8x128xi1>, vector<8x128xf32>
    %c0_1 = arith.constant 0 : index
    %c0_2 = arith.constant 0 : index
    %c0_3 = arith.constant 0 : index
    %6 = vector.load %arg2[%c0_1, %c0_2, %c0_3] : memref<4x128x128xf32, #tpu.memory_space<vmem>>, vector<1x128x128xf32>
    %7 = vector.shape_cast %6 : vector<1x128x128xf32> to vector<128x128xf32>
    %cst_4 = arith.constant dense<0.000000e+00> : vector<8x128xf32>
    %8 = tpu.matmul %0, %7, %cst_4 {dimension_numbers = #tpu.dot_dimension_numbers<[1], [0], [0], [1], [0, 0, 1, 1], [], []>} : vector<8x128xf32>, vector<128x128xf32>, vector<8x128xf32> -> vector<8x128xf32>
    %cst_5 = arith.constant 2.000000e-01 : f32
    %9 = vector.broadcast %cst_5 : f32 to vector<8x128xf32>
    %10 = arith.mulf %9, %8 : vector<8x128xf32>
    %11 = arith.maximumf %8, %10 : vector<8x128xf32>
    %12 = arith.addf %11, %5 : vector<8x128xf32>
    %c1 = arith.constant 1 : index
    %c0_6 = arith.constant 0 : index
    %c0_7 = arith.constant 0 : index
    %13 = vector.load %arg2[%c1, %c0_6, %c0_7] : memref<4x128x128xf32, #tpu.memory_space<vmem>>, vector<1x128x128xf32>
    %14 = vector.shape_cast %13 : vector<1x128x128xf32> to vector<128x128xf32>
    %cst_8 = arith.constant dense<0.000000e+00> : vector<8x128xf32>
    %15 = tpu.matmul %12, %14, %cst_8 {dimension_numbers = #tpu.dot_dimension_numbers<[1], [0], [0], [1], [0, 0, 1, 1], [], []>} : vector<8x128xf32>, vector<128x128xf32>, vector<8x128xf32> -> vector<8x128xf32>
    %cst_9 = arith.constant 2.000000e-01 : f32
    %16 = vector.broadcast %cst_9 : f32 to vector<8x128xf32>
    %17 = arith.mulf %16, %15 : vector<8x128xf32>
    %18 = arith.maximumf %15, %17 : vector<8x128xf32>
    %19 = arith.addf %18, %5 : vector<8x128xf32>
    %c2 = arith.constant 2 : index
    %c0_10 = arith.constant 0 : index
    %c0_11 = arith.constant 0 : index
    %20 = vector.load %arg2[%c2, %c0_10, %c0_11] : memref<4x128x128xf32, #tpu.memory_space<vmem>>, vector<1x128x128xf32>
    %21 = vector.shape_cast %20 : vector<1x128x128xf32> to vector<128x128xf32>
    %cst_12 = arith.constant dense<0.000000e+00> : vector<8x128xf32>
    %22 = tpu.matmul %19, %21, %cst_12 {dimension_numbers = #tpu.dot_dimension_numbers<[1], [0], [0], [1], [0, 0, 1, 1], [], []>} : vector<8x128xf32>, vector<128x128xf32>, vector<8x128xf32> -> vector<8x128xf32>
    %cst_13 = arith.constant 2.000000e-01 : f32
    %23 = vector.broadcast %cst_13 : f32 to vector<8x128xf32>
    %24 = arith.mulf %23, %22 : vector<8x128xf32>
    %25 = arith.maximumf %22, %24 : vector<8x128xf32>
    %26 = arith.addf %25, %5 : vector<8x128xf32>
    %c3 = arith.constant 3 : index
    %c0_14 = arith.constant 0 : index
    %c0_15 = arith.constant 0 : index
    %27 = vector.load %arg2[%c3, %c0_14, %c0_15] : memref<4x128x128xf32, #tpu.memory_space<vmem>>, vector<1x128x128xf32>
    %28 = vector.shape_cast %27 : vector<1x128x128xf32> to vector<128x128xf32>
    %cst_16 = arith.constant dense<0.000000e+00> : vector<8x128xf32>
    %29 = tpu.matmul %26, %28, %cst_16 {dimension_numbers = #tpu.dot_dimension_numbers<[1], [0], [0], [1], [0, 0, 1, 1], [], []>} : vector<8x128xf32>, vector<128x128xf32>, vector<8x128xf32> -> vector<8x128xf32>
    %c0_17 = arith.constant 0 : index
    %c0_18 = arith.constant 0 : index
    %30 = vector.load %arg3[%c0_17, %c0_18] : memref<8x128xf32, #tpu.memory_space<vmem>>, vector<8x128xf32>
    tpu.vector_store %arg3[%c0_17, %c0_18], %29 {strides = array<i32>} : memref<8x128xf32, #tpu.memory_space<vmem>>, vector<8x128xf32>,
    return
  }
  func.func @transform_0(%arg0: i32) -> (i32, i32) {
    %c0_i32 = arith.constant 0 : i32
    %c0_i32_0 = arith.constant 0 : i32
    return %arg0, %c0_i32 : i32, i32
  }
  func.func @transform_1(%arg0: i32) -> (i32, i32, i32) {
    %c0_i32 = arith.constant 0 : i32
    %c0_i32_0 = arith.constant 0 : i32
    %c0_i32_1 = arith.constant 0 : i32
    %c0_i32_2 = arith.constant 0 : i32
    return %c0_i32, %c0_i32_0, %c0_i32_1 : i32, i32, i32
  }
  func.func @transform_2(%arg0: i32) -> (i32, i32) {
    %c0_i32 = arith.constant 0 : i32
    %c0_i32_0 = arith.constant 0 : i32
    return %arg0, %c0_i32 : i32, i32
  }
}

</mosaic_0001>

<llo_original>
// kernel: tpu_custom_call.1
$region0: #{tpu_custom_call.1}
  #allocation0 [shape = 'u32[]', space=smem, size = 0x4, offset = 0x4, fixed_abs, tag = 'smem constant byte address 0x4 - core index']
  #allocation1 [shape = 'u32[72,128]{1,0:T(1,128)}', space=vmem, size = 0x9000, scoped, tag = 'internal scratch']
  %s0 = inlined_call_operand.hbm [shape: f32[8,128], index: 0, kind: input, shape index: {}]
  %s1 = inlined_call_operand.hbm [shape: f32[4,128,128], index: 1, kind: input, shape index: {}]
  %s2 = inlined_call_operand.hbm [shape: f32[8,128], index: 2, kind: output, shape index: {}]
  %s3 = sld [smem:[#allocation0]]
  $region26: #{tpu_custom_call.1} parent=0
    _
  %s5 = ssub.s32 1, %s3
  %s6 = scalar_select 0, %s5, %s3
  $region1: #{tpu_custom_call.1} parent=0
    #allocation2 [shape = 'u8[4096]{0}', space=vmem, size = 0x1000, scoped, tag = 'input window, operand 0, single buffered']
    #allocation3 [shape = 's32[1]{0}', space=sflag, size = 0x4, scoped, tag = 'scoped memory for tpu_custom_call.1']
    #allocation4 [shape = 's32[1]{0}', space=sflag, size = 0x4, scoped, tag = 'scoped memory for tpu_custom_call.1']
    #allocation5 [shape = 'u8[262144]{0}', space=vmem, size = 0x40000, scoped, tag = 'input window, operand 1, single buffered']
    #allocation6 [shape = 's32[1]{0}', space=sflag, size = 0x4, scoped, tag = 'scoped memory for tpu_custom_call.1']
    #allocation7 [shape = 'u8[4096]{0}', space=vmem, size = 0x1000, scoped, tag = 'output window, operand 0, single buffered']
    %7 = vsyncpa [#allocation3], 0
    %8 = vsyncpa [#allocation6], 0
    %9 = vsyncpa [#allocation4], 0
    // Predicated region
    $region2: #{tpu_custom_call.1} parent=1 // pred_check
      _
    $region3: #{tpu_custom_call.1} parent=1 // pred_check_branch
      %11 = sbr.rel (0) target = $region5
    $region4: #{tpu_custom_call.1} parent=1 // pred_region
      %13 = vsyncadd [#allocation3], 0
      %s15 = sshll.u32 %s0, 4
      %s16 = int_to_ptr.hbm [resolvable:$true] %s15
      %s17 = sshll.u32 [#allocation2], 4
      %s18 = int_to_ptr.vmem [resolvable:$true] %s17
      %20 = dma.hbm_to_vmem [thread:$0]  %s16, 128, %s18, [#allocation3]
    $region5: #{tpu_custom_call.1} parent=1 // pred_fallthru
      _
    // Predicated region
    $region6: #{tpu_custom_call.1} parent=1 // pred_check
      _
    $region7: #{tpu_custom_call.1} parent=1 // pred_check_branch
      %22 = sbr.rel (0) target = $region9
    $region8: #{tpu_custom_call.1} parent=1 // pred_region
      %24 = vsyncadd [#allocation6], 0
      %s25 = sshll.u32 %s1, 4
      %s26 = int_to_ptr.hbm [resolvable:$true] %s25
      %s27 = sshll.u32 [#allocation5], 4
      %s28 = int_to_ptr.vmem [resolvable:$true] %s27
      %33 = dma.hbm_to_vmem [thread:$0]  %s26, 8192, %s28, [#allocation6], 128, 128, 8
    $region9: #{tpu_custom_call.1} parent=1 // pred_fallthru
      _
    // Predicated region
    $region10: #{tpu_custom_call.1} parent=1 // pred_check
      _
    $region11: #{tpu_custom_call.1} parent=1 // pred_check_branch
      %35 = sbr.rel (0) target = $region13
    $region12: #{tpu_custom_call.1} parent=1 // pred_region
      %37 = dma.done [#allocation3], 128
    $region13: #{tpu_custom_call.1} parent=1 // pred_fallthru
      _
    // Predicated region
    $region14: #{tpu_custom_call.1} parent=1 // pred_check
      _
    $region15: #{tpu_custom_call.1} parent=1 // pred_check_branch
      %39 = sbr.rel (0) target = $region17
    $region16: #{tpu_custom_call.1} parent=1 // pred_region
      %41 = dma.done [#allocation6], 8192
    $region17: #{tpu_custom_call.1} parent=1 // pred_fallthru
      _
    %v42 = vld [vmem:[#allocation2] sm:$0xff]
    %v43 = vlaneseq
    %v44 = vand.u32 %v43, 127
    %vm45 = vcmp.ge.s32.totalorder %v44, 32
    %v46 = vsel %vm45, %v42, 0.0
    %v47 = vld [vmem:[#allocation5] sm:$0xff]
    %v48 = vld [vmem:[#allocation5 + $0x8] sm:$0xff]
    %v49 = vld [vmem:[#allocation5 + $0x10] sm:$0xff]
    %v50 = vld [vmem:[#allocation5 + $0x18] sm:$0xff]
    %v51 = vld [vmem:[#allocation5 + $0x20] sm:$0xff]
    %v52 = vld [vmem:[#allocation5 + $0x28] sm:$0xff]
    %v53 = vld [vmem:[#allocation5 + $0x30] sm:$0xff]
    %v54 = vld [vmem:[#allocation5 + $0x38] sm:$0xff]
    %v55 = vld [vmem:[#allocation5 + $0x40] sm:$0xff]
    %v56 = vld [vmem:[#allocation5 + $0x48] sm:$0xff]
    %v57 = vld [vmem:[#allocation5 + $0x50] sm:$0xff]
    %v58 = vld [vmem:[#allocation5 + $0x58] sm:$0xff]
    %v59 = vld [vmem:[#allocation5 + $0x60] sm:$0xff]
    %v60 = vld [vmem:[#allocation5 + $0x68] sm:$0xff]
    %v61 = vld [vmem:[#allocation5 + $0x70] sm:$0xff]
    %v62 = vld [vmem:[#allocation5 + $0x78] sm:$0xff]
    %63 = vmatpush.msra.mxu0 %v62
    %64 = vmatpush.msra.mxu0 %v61
    %65 = vmatpush.msra.mxu0 %v60
    %66 = vmatpush.msra.mxu0 %v59
    %67 = vmatpush.msra.mxu0 %v58
    %68 = vmatpush.msra.mxu0 %v57
    %69 = vmatpush.msra.mxu0 %v56
    %70 = vmatpush.msra.mxu0 %v55
    %71 = vmatpush.msra.mxu0 %v54
    %72 = vmatpush.msra.mxu0 %v53
    %73 = vmatpush.msra.mxu0 %v52
    %74 = vmatpush.msra.mxu0 %v51
    %75 = vmatpush.msra.mxu0 %v50
    %76 = vmatpush.msra.mxu0 %v49
    %77 = vmatpush.msra.mxu0 %v48
    %78 = vmatpush.msra.mxu0 %v47
    %79 = vmatmul.f32.gmra.mxu0 %v42
    %v80 = vpop.f32.mrf.mxu0
    %v81 = vadd.f32 0.0, %v80
    %82 = vdwg.mxu0
    %v83 = vmul.f32 %v81, 0.2
    %v84 = vmax.f32 %v81, %v83
    %v85 = vadd.f32 %v84, %v46
    %s86 = scalar_lea.vmem [#allocation5], 128
    %v87 = vld [vmem:[%s86] sm:$0xff]
    %v88 = vld [vmem:[%s86 + $0x8] sm:$0xff]
    %v89 = vld [vmem:[%s86 + $0x10] sm:$0xff]
    %v90 = vld [vmem:[%s86 + $0x18] sm:$0xff]
    %v91 = vld [vmem:[%s86 + $0x20] sm:$0xff]
    %v92 = vld [vmem:[%s86 + $0x28] sm:$0xff]
    %v93 = vld [vmem:[%s86 + $0x30] sm:$0xff]
    %v94 = vld [vmem:[%s86 + $0x38] sm:$0xff]
    %v95 = vld [vmem:[%s86 + $0x40] sm:$0xff]
    %v96 = vld [vmem:[%s86 + $0x48] sm:$0xff]
    %v97 = vld [vmem:[%s86 + $0x50] sm:$0xff]
    %v98 = vld [vmem:[%s86 + $0x58] sm:$0xff]
    %v99 = vld [vmem:[%s86 + $0x60] sm:$0xff]
    %v100 = vld [vmem:[%s86 + $0x68] sm:$0xff]
    %v101 = vld [vmem:[%s86 + $0x70] sm:$0xff]
    %v102 = vld [vmem:[%s86 + $0x78] sm:$0xff]
    %103 = vmatpush.msra.mxu0 %v102
    %104 = vmatpush.msra.mxu0 %v101
    %105 = vmatpush.msra.mxu0 %v100
    %106 = vmatpush.msra.mxu0 %v99
    %107 = vmatpush.msra.mxu0 %v98
    %108 = vmatpush.msra.mxu0 %v97
    %109 = vmatpush.msra.mxu0 %v96
    %110 = vmatpush.msra.mxu0 %v95
    %111 = vmatpush.msra.mxu0 %v94
    %112 = vmatpush.msra.mxu0 %v93
    %113 = vmatpush.msra.mxu0 %v92
    %114 = vmatpush.msra.mxu0 %v91
    %115 = vmatpush.msra.mxu0 %v90
    %116 = vmatpush.msra.mxu0 %v89
    %117 = vmatpush.msra.mxu0 %v88
    %118 = vmatpush.msra.mxu0 %v87
    %119 = vmatmul.f32.gmra.mxu0 %v85
    %v120 = vpop.f32.mrf.mxu0
    %v121 = vadd.f32 0.0, %v120
    %122 = vdwg.mxu0
    %v123 = vmul.f32 %v121, 0.2
    %v124 = vmax.f32 %v121, %v123
    %v125 = vadd.f32 %v124, %v46
    %s126 = scalar_lea.vmem [#allocation5], 256
    %v127 = vld [vmem:[%s126] sm:$0xff]
    %v128 = vld [vmem:[%s126 + $0x8] sm:$0xff]
    %v129 = vld [vmem:[%s126 + $0x10] sm:$0xff]
    %v130 = vld [vmem:[%s126 + $0x18] sm:$0xff]
    %v131 = vld [vmem:[%s126 + $0x20] sm:$0xff]
    %v132 = vld [vmem:[%s126 + $0x28] sm:$0xff]
    %v133 = vld [vmem:[%s126 + $0x30] sm:$0xff]
    %v134 = vld [vmem:[%s126 + $0x38] sm:$0xff]
    %v135 = vld [vmem:[%s126 + $0x40] sm:$0xff]
    %v136 = vld [vmem:[%s126 + $0x48] sm:$0xff]
    %v137 = vld [vmem:[%s126 + $0x50] sm:$0xff]
    %v138 = vld [vmem:[%s126 + $0x58] sm:$0xff]
    %v139 = vld [vmem:[%s126 + $0x60] sm:$0xff]
    %v140 = vld [vmem:[%s126 + $0x68] sm:$0xff]
    %v141 = vld [vmem:[%s126 + $0x70] sm:$0xff]
    %v142 = vld [vmem:[%s126 + $0x78] sm:$0xff]
    %143 = vmatpush.msra.mxu0 %v142
    %144 = vmatpush.msra.mxu0 %v141
    %145 = vmatpush.msra.mxu0 %v140
    %146 = vmatpush.msra.mxu0 %v139
    %147 = vmatpush.msra.mxu0 %v138
    %148 = vmatpush.msra.mxu0 %v137
    %149 = vmatpush.msra.mxu0 %v136
    %150 = vmatpush.msra.mxu0 %v135
    %151 = vmatpush.msra.mxu0 %v134
    %152 = vmatpush.msra.mxu0 %v133
    %153 = vmatpush.msra.mxu0 %v132
    %154 = vmatpush.msra.mxu0 %v131
    %155 = vmatpush.msra.mxu0 %v130
    %156 = vmatpush.msra.mxu0 %v129
    %157 = vmatpush.msra.mxu0 %v128
    %158 = vmatpush.msra.mxu0 %v127
    %159 = vmatmul.f32.gmra.mxu0 %v125
    %v160 = vpop.f32.mrf.mxu0
    %v161 = vadd.f32 0.0, %v160
    %162 = vdwg.mxu0
    %v163 = vmul.f32 %v161, 0.2
    %v164 = vmax.f32 %v161, %v163
    %v165 = vadd.f32 %v164, %v46
    %s166 = scalar_lea.vmem [#allocation5], 384
    %v167 = vld [vmem:[%s166] sm:$0xff]
    %v168 = vld [vmem:[%s166 + $0x8] sm:$0xff]
    %v169 = vld [vmem:[%s166 + $0x10] sm:$0xff]
    %v170 = vld [vmem:[%s166 + $0x18] sm:$0xff]
    %v171 = vld [vmem:[%s166 + $0x20] sm:$0xff]
    %v172 = vld [vmem:[%s166 + $0x28] sm:$0xff]
    %v173 = vld [vmem:[%s166 + $0x30] sm:$0xff]
    %v174 = vld [vmem:[%s166 + $0x38] sm:$0xff]
    %v175 = vld [vmem:[%s166 + $0x40] sm:$0xff]
    %v176 = vld [vmem:[%s166 + $0x48] sm:$0xff]
    %v177 = vld [vmem:[%s166 + $0x50] sm:$0xff]
    %v178 = vld [vmem:[%s166 + $0x58] sm:$0xff]
    %v179 = vld [vmem:[%s166 + $0x60] sm:$0xff]
    %v180 = vld [vmem:[%s166 + $0x68] sm:$0xff]
    %v181 = vld [vmem:[%s166 + $0x70] sm:$0xff]
    %v182 = vld [vmem:[%s166 + $0x78] sm:$0xff]
    %183 = vmatpush.msra.mxu0 %v182
    %184 = vmatpush.msra.mxu0 %v181
    %185 = vmatpush.msra.mxu0 %v180
    %186 = vmatpush.msra.mxu0 %v179
    %187 = vmatpush.msra.mxu0 %v178
    %188 = vmatpush.msra.mxu0 %v177
    %189 = vmatpush.msra.mxu0 %v176
    %190 = vmatpush.msra.mxu0 %v175
    %191 = vmatpush.msra.mxu0 %v174
    %192 = vmatpush.msra.mxu0 %v173
    %193 = vmatpush.msra.mxu0 %v172
    %194 = vmatpush.msra.mxu0 %v171
    %195 = vmatpush.msra.mxu0 %v170
    %196 = vmatpush.msra.mxu0 %v169
    %197 = vmatpush.msra.mxu0 %v168
    %198 = vmatpush.msra.mxu0 %v167
    %199 = vmatmul.f32.gmra.mxu0 %v165
    %v200 = vpop.f32.mrf.mxu0
    %v201 = vadd.f32 0.0, %v200
    %202 = vdwg.mxu0
    %203 = vst [vmem:[#allocation7] sm:$0xff] %v201
    // Predicated region
    $region18: #{tpu_custom_call.1} parent=1 // pred_check
      _
    $region19: #{tpu_custom_call.1} parent=1 // pred_check_branch
      %205 = sbr.rel (0) target = $region21
    $region20: #{tpu_custom_call.1} parent=1 // pred_region
      %207 = vsyncadd [#allocation4], 0
      %s209 = sshll.u32 [#allocation7], 4
      %s210 = int_to_ptr.vmem [resolvable:$true] %s209
      %s211 = sshll.u32 %s2, 4
      %s212 = int_to_ptr.hbm [resolvable:$true] %s211
      %214 = dma.vmem_to_hbm [thread:$0]  %s210, 128, %s212, [#allocation4]
    $region21: #{tpu_custom_call.1} parent=1 // pred_fallthru
      _
    // Predicated region
    $region22: #{tpu_custom_call.1} parent=1 // pred_check
      _
    $region23: #{tpu_custom_call.1} parent=1 // pred_check_branch
      %216 = sbr.rel (0) target = $region25
    $region24: #{tpu_custom_call.1} parent=1 // pred_region
      %218 = dma.done [#allocation4], 128
    $region25: #{tpu_custom_call.1} parent=1 // pred_fallthru
      _
    %219 = vsyncpa [#allocation3], 1
    %220 = vsyncpa [#allocation6], 1
    %221 = vsyncpa [#allocation4], 1

</llo_original>
